<compile_context>
chip_gen: v5e
topology: v5e:2x2
jax: 0.10.0
libtpu: 0.0.40
codegen_flags: <defaults>
</compile_context>

<pallas_src>
import functools

import jax
import jax.numpy as jnp
from jax import lax
from jax.experimental import pallas as pl
from jax.experimental.pallas import tpu as pltpu


def _downsample_kernel(patches_ref, te_ref, wc_ref, bc_ref, gamma_ref, beta_ref,
                       out_ref, *, groups, eps):
    # patches_ref: (1, K, N)     bf16   K = Cin*2*2, N = (H/2)*(W/2)
    # te_ref:      (1, Cout, 1)  f32    relu(t @ Wt^T + bt), precomputed in wrapper
    # wc_ref:      (Cout, K)     bf16
    # bc_ref / gamma_ref / beta_ref: (Cout, 1) f32
    # out_ref:     (1, Cout, N)  f32

    # ---- conv-as-GEMM on the MXU: bf16 operands, f32 accumulation ----
    y = jnp.dot(wc_ref[...], patches_ref[0],
                preferred_element_type=jnp.float32)               # (Cout, N) f32
    y = y + bc_ref[...]

    cout, n = y.shape
    cg = cout // groups
    inv_cnt = 1.0 / (cg * n)

    # ---- GroupNorm: per-(sample, group) stats over (channels-in-group, spatial).
    # Static channel slices keep everything lane-dense (no 3-D reshape).
    means, invs = [], []
    for g in range(groups):
        yg = y[g * cg:(g + 1) * cg, :]                                      # (cg, N)
        m = jnp.sum(yg, axis=(0, 1), keepdims=True) * inv_cnt               # (1, 1)
        v = jnp.sum((yg - m) ** 2, axis=(0, 1), keepdims=True) * inv_cnt    # biased var
        means.append(jnp.broadcast_to(m, (cg, 1)))
        invs.append(jnp.broadcast_to(lax.rsqrt(v + eps), (cg, 1)))
    mean_c = jnp.concatenate(means, axis=0)                       # (Cout, 1)
    inv_c = jnp.concatenate(invs, axis=0)                         # (Cout, 1)

    y = (y - mean_c) * (inv_c * gamma_ref[...]) + beta_ref[...]   # GN affine
    y = jnp.maximum(y, 0.0)                                       # ReLU
    y = y + te_ref[0]                                             # + time emb (bcast over N)

    # TODO(synk): emit bf16 here if the next layer consumes bf16 (halves writeback).
    out_ref[0] = y.astype(out_ref.dtype)


def downsample_pallas(x, t, params, *, groups, eps=1e-5, mxu_dtype=jnp.bfloat16):
    """x: (B, Cin, H, W) NCHW, t: (B, T). Returns (B, Cout, H//2, W//2) NCHW."""
    wc, bc, gamma, beta, wt, bt = (params["conv_w"], params["conv_b"],
                                   params["gn_w"], params["gn_b"],
                                   params["lin_w"], params["lin_b"])
    B, Cin, H, W = x.shape
    Cout = wc.shape[0]
    Hh, Wh = H // 2, W // 2
    N = Hh * Wh
    K = Cin * 4

    # Hoisted time-MLP: one (B,T)x(T,Cout) GEMM + ReLU in f32 (exact PyTorch semantics).
    te = jnp.maximum(t.astype(jnp.float32) @ wt.T.astype(jnp.float32) + bt, 0.0)
    te = te.reshape(B, Cout, 1)

    # NCHW -> (B, K, N) patches; cast to bf16 *before* the transpose to halve its
    # HBM traffic.  K flattens (cin, kh, kw) to match the OIHW weight flatten.
    xk = x.astype(mxu_dtype)
    patches = xk.reshape(B, Cin, Hh, 2, Wh, 2)
    patches = patches.transpose(0, 1, 3, 5, 2, 4).reshape(B, K, N)
    wck = wc.reshape(Cout, K).astype(mxu_dtype)

    bc2 = bc.reshape(Cout, 1).astype(jnp.float32)
    gamma2 = gamma.reshape(Cout, 1).astype(jnp.float32)
    beta2 = beta.reshape(Cout, 1).astype(jnp.float32)

    # VMEM budget: double-buffered patch + output tiles + resident weights + temps.
    isz = jnp.dtype(mxu_dtype).itemsize
    est = 2 * K * N * isz + 4 * Cout * N * 4 + Cout * K * isz + 8 * Cout * 4
    vmem_limit = int(min(64 * 2**20, max(32 * 2**20, 2 * est)))

    kernel = functools.partial(_downsample_kernel, groups=groups, eps=eps)

    out = pl.pallas_call(
        kernel,
        out_shape=jax.ShapeDtypeStruct((B, Cout, N), jnp.float32),
        grid=(B,),
        in_specs=[
            pl.BlockSpec((1, K, N), lambda b: (b, 0, 0)),      # patches (bf16)
            pl.BlockSpec((1, Cout, 1), lambda b: (b, 0, 0)),   # time embedding row
            pl.BlockSpec((Cout, K), lambda b: (0, 0)),         # conv weight (bf16)
            pl.BlockSpec((Cout, 1), lambda b: (0, 0)),         # conv bias
            pl.BlockSpec((Cout, 1), lambda b: (0, 0)),         # GN gamma
            pl.BlockSpec((Cout, 1), lambda b: (0, 0)),         # GN beta
        ],
        out_specs=pl.BlockSpec((1, Cout, N), lambda b: (b, 0, 0)),
        compiler_params=pltpu.CompilerParams(
            dimension_semantics=("parallel",),
            vmem_limit_bytes=vmem_limit),
    )(patches, te, wck, bc2, gamma2, beta2)

    # (B, Cout, N) -> NCHW: pure reshape, no transpose / extra HBM pass.
    return out.reshape(B, Cout, Hh, Wh)


def downsample_reference(x, t, params, *, groups, eps=1e-5, mxu_dtype=None):
    """Pure-JAX reference mirroring the PyTorch forward.

    If `mxu_dtype` is given, the conv operands are rounded through that dtype
    (mirroring the kernel's bf16 MXU inputs) but all arithmetic stays f32.
    """
    wc, bc, gamma, beta, wt, bt = (params["conv_w"], params["conv_b"],
                                   params["gn_w"], params["gn_b"],
                                   params["lin_w"], params["lin_b"])
    xr, wr = x, wc
    if mxu_dtype is not None:
        xr = x.astype(mxu_dtype).astype(jnp.float32)
        wr = wc.astype(mxu_dtype).astype(jnp.float32)
    y = lax.conv_general_dilated(
        xr, wr, window_strides=(2, 2), padding="VALID",
        dimension_numbers=("NCHW", "OIHW", "NCHW"))
    y = y + bc[None, :, None, None]
    B, C, H, W = y.shape
    yg = y.reshape(B, groups, C // groups, H, W)
    mean = jnp.mean(yg, axis=(2, 3, 4), keepdims=True)
    var = jnp.mean((yg - mean) ** 2, axis=(2, 3, 4), keepdims=True)
    y = ((yg - mean) * lax.rsqrt(var + eps)).reshape(B, C, H, W)
    y = y * gamma[None, :, None, None] + beta[None, :, None, None]
    y = jnp.maximum(y, 0.0)
    te = jnp.maximum(t @ wt.T + bt, 0.0)
    return y + te[:, :, None, None]


if __name__ == "__main__":
    B, Cin, Cout, H, W, Tdim = 2, 4, 8, 16, 16, 32
    groups = Cout // 4   # GoodUNet convention: groups = out_channels // 4

    key = jax.random.PRNGKey(0)
    kx, kt, k1, k2, k3, k4 = jax.random.split(key, 6)

    x = jax.random.normal(kx, (B, Cin, H, W), dtype=jnp.float32)
    t = jax.random.normal(kt, (B, Tdim), dtype=jnp.float32)

    params = {
        "conv_w": 0.1 * jax.random.normal(k1, (Cout, Cin, 2, 2), jnp.float32),
        "conv_b": 0.05 * jax.random.normal(k2, (Cout,), jnp.float32),
        "gn_w": jnp.ones((Cout,), jnp.float32),
        "gn_b": jnp.zeros((Cout,), jnp.float32),
        "lin_w": 0.1 * jax.random.normal(k3, (Cout, Tdim), jnp.float32),
        "lin_b": 0.05 * jax.random.normal(k4, (Cout,), jnp.float32),
    }

    out = downsample_pallas(x, t, params, groups=groups)
    out = jax.block_until_ready(out)
    assert out.shape == (B, Cout, H // 2, W // 2), out.shape

    # Tight check vs. a reference with matching bf16 rounding of the MXU operands
    # (same values into the conv; f32 accumulation on both sides).
    ref_bf16 = downsample_reference(x, t, params, groups=groups,
                                    mxu_dtype=jnp.bfloat16)
    err_matched = float(jnp.max(jnp.abs(out - ref_bf16)))
    assert jnp.allclose(out, ref_bf16, atol=2e-4, rtol=2e-4), err_matched

    # Loose sanity check vs. the pure-f32 PyTorch-equivalent reference; the only
    # difference is the bf16 rounding of the conv operands.
    ref_f32 = downsample_reference(x, t, params, groups=groups)
    err_f32 = float(jnp.max(jnp.abs(out - ref_f32)))
    assert jnp.allclose(out, ref_f32, atol=5e-2, rtol=5e-2), err_f32

    print("KERNEL_OK")
</pallas_src>

<mosaic_0001>
module attributes {stable_mosaic.version = 11 : i64} {
  func.func @_downsample_kernel(%arg0: i32, %arg1: memref<1x16x64xbf16, #tpu.memory_space<vmem>>, %arg2: memref<1x8x1xf32, #tpu.memory_space<vmem>>, %arg3: memref<8x16xbf16, #tpu.memory_space<vmem>>, %arg4: memref<8x1xf32, #tpu.memory_space<vmem>>, %arg5: memref<8x1xf32, #tpu.memory_space<vmem>>, %arg6: memref<8x1xf32, #tpu.memory_space<vmem>>, %arg7: memref<1x8x64xf32, #tpu.memory_space<vmem>>) attributes {dimension_semantics = [#tpu.dimension_semantics<parallel>], iteration_bounds = array<i64: 2>, scalar_prefetch = 0 : i64, scratch_operands = 0 : i64, tpu.core_type = #tpu.core_type<tc>, window_params = [{transform_indices = @transform_0, window_bounds = array<i64: 1, 16, 64>}, {transform_indices = @transform_1, window_bounds = array<i64: 1, 8, 1>}, {pipeline_mode = #tpu.pipeline_mode<synchronous>, transform_indices = @transform_2, window_bounds = array<i64: 8, 16>}, {pipeline_mode = #tpu.pipeline_mode<synchronous>, transform_indices = @transform_3, window_bounds = array<i64: 8, 1>}, {pipeline_mode = #tpu.pipeline_mode<synchronous>, transform_indices = @transform_4, window_bounds = array<i64: 8, 1>}, {pipeline_mode = #tpu.pipeline_mode<synchronous>, transform_indices = @transform_5, window_bounds = array<i64: 8, 1>}, {transform_indices = @transform_6, window_bounds = array<i64: 1, 8, 64>}]} {
    %c0 = arith.constant 0 : index
    %c0_0 = arith.constant 0 : index
    %0 = vector.load %arg3[%c0, %c0_0] : memref<8x16xbf16, #tpu.memory_space<vmem>>, vector<8x16xbf16>
    %c0_1 = arith.constant 0 : index
    %c0_2 = arith.constant 0 : index
    %c0_3 = arith.constant 0 : index
    %1 = vector.load %arg1[%c0_1, %c0_2, %c0_3] : memref<1x16x64xbf16, #tpu.memory_space<vmem>>, vector<1x16x64xbf16>
    %2 = vector.shape_cast %1 : vector<1x16x64xbf16> to vector<16x64xbf16>
    %cst = arith.constant dense<0.000000e+00> : vector<8x64xf32>
    %3 = tpu.matmul %0, %2, %cst {dimension_numbers = #tpu.dot_dimension_numbers<[1], [0], [0], [1], [0, 0, 1, 1], [], []>} : vector<8x16xbf16>, vector<16x64xbf16>, vector<8x64xf32> -> vector<8x64xf32>
    %c0_4 = arith.constant 0 : index
    %c0_5 = arith.constant 0 : index
    %4 = vector.load %arg4[%c0_4, %c0_5] : memref<8x1xf32, #tpu.memory_space<vmem>>, vector<8x1xf32>
    %5 = vector.broadcast %4 : vector<8x1xf32> to vector<8x64xf32>
    %6 = arith.addf %3, %5 : vector<8x64xf32>
    %7 = vector.extract_strided_slice %6 {offsets = [0, 0], sizes = [4, 64], strides = [1, 1]} : vector<8x64xf32> to vector<4x64xf32>
    %8 = vector.shape_cast %7 : vector<4x64xf32> to vector<1x4x64xf32>
    %cst_6 = arith.constant dense<0.000000e+00> : vector<1xf32>
    %9 = vector.multi_reduction <add>, %8, %cst_6 [1, 2] : vector<1x4x64xf32> to vector<1xf32>
    %10 = vector.shape_cast %9 : vector<1xf32> to vector<1x1x1xf32>
    %11 = vector.extract %10[0, 0, 0] : f32 from vector<1x1x1xf32>
    %12 = vector.broadcast %11 : f32 to vector<1x1xf32>
    %cst_7 = arith.constant 3.906250e-03 : f32
    %13 = vector.broadcast %cst_7 : f32 to vector<1x1xf32>
    %14 = arith.mulf %12, %13 : vector<1x1xf32>
    %15 = vector.broadcast %14 : vector<1x1xf32> to vector<4x64xf32>
    %16 = arith.subf %7, %15 : vector<4x64xf32>
    %17 = arith.mulf %16, %16 : vector<4x64xf32>
    %18 = vector.shape_cast %17 : vector<4x64xf32> to vector<1x4x64xf32>
    %cst_8 = arith.constant dense<0.000000e+00> : vector<1xf32>
    %19 = vector.multi_reduction <add>, %18, %cst_8 [1, 2] : vector<1x4x64xf32> to vector<1xf32>
    %20 = vector.shape_cast %19 : vector<1xf32> to vector<1x1x1xf32>
    %21 = vector.extract %20[0, 0, 0] : f32 from vector<1x1x1xf32>
    %22 = vector.broadcast %21 : f32 to vector<1x1xf32>
    %cst_9 = arith.constant 3.906250e-03 : f32
    %23 = vector.broadcast %cst_9 : f32 to vector<1x1xf32>
    %24 = arith.mulf %22, %23 : vector<1x1xf32>
    %25 = vector.shape_cast %14 : vector<1x1xf32> to vector<1x1xf32>
    %26 = vector.broadcast %25 : vector<1x1xf32> to vector<4x1xf32>
    %cst_10 = arith.constant 9.99999974E-6 : f32
    %27 = vector.broadcast %cst_10 : f32 to vector<1x1xf32>
    %28 = arith.addf %24, %27 : vector<1x1xf32>
    %29 = math.rsqrt %28 : vector<1x1xf32>
    %30 = vector.shape_cast %29 : vector<1x1xf32> to vector<1x1xf32>
    %31 = vector.broadcast %30 : vector<1x1xf32> to vector<4x1xf32>
    %32 = vector.extract_strided_slice %6 {offsets = [4, 0], sizes = [4, 64], strides = [1, 1]} : vector<8x64xf32> to vector<4x64xf32>
    %33 = vector.shape_cast %32 : vector<4x64xf32> to vector<1x4x64xf32>
    %cst_11 = arith.constant dense<0.000000e+00> : vector<1xf32>
    %34 = vector.multi_reduction <add>, %33, %cst_11 [1, 2] : vector<1x4x64xf32> to vector<1xf32>
    %35 = vector.shape_cast %34 : vector<1xf32> to vector<1x1x1xf32>
    %36 = vector.extract %35[0, 0, 0] : f32 from vector<1x1x1xf32>
    %37 = vector.broadcast %36 : f32 to vector<1x1xf32>
    %cst_12 = arith.constant 3.906250e-03 : f32
    %38 = vector.broadcast %cst_12 : f32 to vector<1x1xf32>
    %39 = arith.mulf %37, %38 : vector<1x1xf32>
    %40 = vector.broadcast %39 : vector<1x1xf32> to vector<4x64xf32>
    %41 = arith.subf %32, %40 : vector<4x64xf32>
    %42 = arith.mulf %41, %41 : vector<4x64xf32>
    %43 = vector.shape_cast %42 : vector<4x64xf32> to vector<1x4x64xf32>
    %cst_13 = arith.constant dense<0.000000e+00> : vector<1xf32>
    %44 = vector.multi_reduction <add>, %43, %cst_13 [1, 2] : vector<1x4x64xf32> to vector<1xf32>
    %45 = vector.shape_cast %44 : vector<1xf32> to vector<1x1x1xf32>
    %46 = vector.extract %45[0, 0, 0] : f32 from vector<1x1x1xf32>
    %47 = vector.broadcast %46 : f32 to vector<1x1xf32>
    %cst_14 = arith.constant 3.906250e-03 : f32
    %48 = vector.broadcast %cst_14 : f32 to vector<1x1xf32>
    %49 = arith.mulf %47, %48 : vector<1x1xf32>
    %50 = vector.shape_cast %39 : vector<1x1xf32> to vector<1x1xf32>
    %51 = vector.broadcast %50 : vector<1x1xf32> to vector<4x1xf32>
    %cst_15 = arith.constant 9.99999974E-6 : f32
    %52 = vector.broadcast %cst_15 : f32 to vector<1x1xf32>
    %53 = arith.addf %49, %52 : vector<1x1xf32>
    %54 = math.rsqrt %53 : vector<1x1xf32>
    %55 = vector.shape_cast %54 : vector<1x1xf32> to vector<1x1xf32>
    %56 = vector.broadcast %55 : vector<1x1xf32> to vector<4x1xf32>
    %57 = tpu.concatenate %26, %51 in 0 : vector<4x1xf32>, vector<4x1xf32> -> vector<8x1xf32>
    %58 = tpu.concatenate %31, %56 in 0 : vector<4x1xf32>, vector<4x1xf32> -> vector<8x1xf32>
    %59 = vector.broadcast %57 : vector<8x1xf32> to vector<8x64xf32>
    %60 = arith.subf %6, %59 : vector<8x64xf32>
    %c0_16 = arith.constant 0 : index
    %c0_17 = arith.constant 0 : index
    %61 = vector.load %arg5[%c0_16, %c0_17] : memref<8x1xf32, #tpu.memory_space<vmem>>, vector<8x1xf32>
    %62 = arith.mulf %58, %61 : vector<8x1xf32>
    %63 = vector.broadcast %62 : vector<8x1xf32> to vector<8x64xf32>
    %64 = arith.mulf %60, %63 : vector<8x64xf32>
    %c0_18 = arith.constant 0 : index
    %c0_19 = arith.constant 0 : index
    %65 = vector.load %arg6[%c0_18, %c0_19] : memref<8x1xf32, #tpu.memory_space<vmem>>, vector<8x1xf32>
    %66 = vector.broadcast %65 : vector<8x1xf32> to vector<8x64xf32>
    %67 = arith.addf %64, %66 : vector<8x64xf32>
    %cst_20 = arith.constant 0.000000e+00 : f32
    %68 = vector.broadcast %cst_20 : f32 to vector<8x64xf32>
    %69 = arith.maximumf %67, %68 : vector<8x64xf32>
    %c0_21 = arith.constant 0 : index
    %c0_22 = arith.constant 0 : index
    %c0_23 = arith.constant 0 : index
    %70 = vector.load %arg2[%c0_21, %c0_22, %c0_23] : memref<1x8x1xf32, #tpu.memory_space<vmem>>, vector<1x8x1xf32>
    %71 = vector.shape_cast %70 : vector<1x8x1xf32> to vector<8x1xf32>
    %72 = vector.broadcast %71 : vector<8x1xf32> to vector<8x64xf32>
    %73 = arith.addf %69, %72 : vector<8x64xf32>
    %c0_24 = arith.constant 0 : index
    %c0_25 = arith.constant 0 : index
    %c0_26 = arith.constant 0 : index
    %74 = vector.load %arg7[%c0_24, %c0_25, %c0_26] : memref<1x8x64xf32, #tpu.memory_space<vmem>>, vector<1x8x64xf32>
    %75 = vector.shape_cast %74 : vector<1x8x64xf32> to vector<8x64xf32>
    %76 = vector.shape_cast %73 : vector<8x64xf32> to vector<1x8x64xf32>
    tpu.vector_store %arg7[%c0_24, %c0_25, %c0_26], %76 {strides = array<i32>} : memref<1x8x64xf32, #tpu.memory_space<vmem>>, vector<1x8x64xf32>,
    return
  }
  func.func @transform_0(%arg0: i32) -> (i32, i32, i32) {
    %c0_i32 = arith.constant 0 : i32
    %c0_i32_0 = arith.constant 0 : i32
    %c0_i32_1 = arith.constant 0 : i32
    return %arg0, %c0_i32, %c0_i32_0 : i32, i32, i32
  }
  func.func @transform_1(%arg0: i32) -> (i32, i32, i32) {
    %c0_i32 = arith.constant 0 : i32
    %c0_i32_0 = arith.constant 0 : i32
    %c0_i32_1 = arith.constant 0 : i32
    return %arg0, %c0_i32, %c0_i32_0 : i32, i32, i32
  }
  func.func @transform_2(%arg0: i32) -> (i32, i32) {
    %c0_i32 = arith.constant 0 : i32
    %c0_i32_0 = arith.constant 0 : i32
    %c0_i32_1 = arith.constant 0 : i32
    return %c0_i32, %c0_i32_0 : i32, i32
  }
  func.func @transform_3(%arg0: i32) -> (i32, i32) {
    %c0_i32 = arith.constant 0 : i32
    %c0_i32_0 = arith.constant 0 : i32
    %c0_i32_1 = arith.constant 0 : i32
    return %c0_i32, %c0_i32_0 : i32, i32
  }
  func.func @transform_4(%arg0: i32) -> (i32, i32) {
    %c0_i32 = arith.constant 0 : i32
    %c0_i32_0 = arith.constant 0 : i32
    %c0_i32_1 = arith.constant 0 : i32
    return %c0_i32, %c0_i32_0 : i32, i32
  }
  func.func @transform_5(%arg0: i32) -> (i32, i32) {
    %c0_i32 = arith.constant 0 : i32
    %c0_i32_0 = arith.constant 0 : i32
    %c0_i32_1 = arith.constant 0 : i32
    return %c0_i32, %c0_i32_0 : i32, i32
  }
  func.func @transform_6(%arg0: i32) -> (i32, i32, i32) {
    %c0_i32 = arith.constant 0 : i32
    %c0_i32_0 = arith.constant 0 : i32
    %c0_i32_1 = arith.constant 0 : i32
    return %arg0, %c0_i32, %c0_i32_0 : i32, i32, i32
  }
}

</mosaic_0001>

<llo_original>
// kernel: tpu_custom_call.1
$region0: #{tpu_custom_call.1}
  #allocation0 [shape = 'u32[]', space=smem, size = 0x4, offset = 0x4, fixed_abs, tag = 'smem constant byte address 0x4 - core index']
  #allocation1 [shape = 'u32[72,128]{1,0:T(1,128)}', space=vmem, size = 0x9000, scoped, tag = 'internal scratch']
  %s0 = inlined_call_operand.vmem [shape: bf16[2,16,64], index: 0, kind: input, shape index: {}]
  %s1 = inlined_call_operand.vmem [shape: f32[2,8,1], index: 1, kind: input, shape index: {}]
  %s2 = inlined_call_operand.vmem [shape: bf16[8,16], index: 2, kind: input, shape index: {}]
  %s3 = inlined_call_operand.vmem [shape: f32[8,1], index: 3, kind: input, shape index: {}]
  %s4 = inlined_call_operand.vmem [shape: f32[8,1], index: 4, kind: input, shape index: {}]
  %s5 = inlined_call_operand.vmem [shape: f32[8,1], index: 5, kind: input, shape index: {}]
  %s6 = inlined_call_operand.hbm [shape: f32[2,8,64], index: 6, kind: output, shape index: {}]
  %s7 = sld [smem:[#allocation0]]
  $region57: #{tpu_custom_call.1} parent=0
    _
  %s9 = ssub.s32 1, %s7
  %s10 = scalar_select 0, %s9, %s7
  $region1: #{tpu_custom_call.1} parent=0
    #allocation2 [shape = 'u8[8192]{0}', space=vmem, size = 0x2000, scoped, tag = 'output window, operand 0']
    #allocation3 [shape = 's32[2]{0}', space=sflag, size = 0x8, scoped, tag = 'scoped memory for tpu_custom_call.1']
    %11 = vsyncpa [#allocation3], 0
    %s12 = scalar_lea.sflag [#allocation3], 1
    %13 = vsyncpa %s12, 0
    loop: start=0, step=1, limit=4
    $region2: #{tpu_custom_call.1} parent=1 // loop_pre_header
      _
    $region3: #{tpu_custom_call.1} parent=1 // loop_header
      %s15 = sphi 0, %s19
      %p16 = scmp.ge.s32.totalorder %s15, 4
      %s25 = sphi 0, %s27
      %s28 = sphi 0, %s25
      %s29 = sphi 0, %s28
      %s45 = sphi 0, %s29
      %s51 = sphi 0, %s53
      %s54 = sphi 0, %s51
      %s55 = sphi 0, %s54
      %s71 = sphi 0, %s55
      %s75 = sphi 0, %s75
      %s77 = sphi 0, %s75
      %s78 = sphi 0, %s77
      %s92 = sphi 0, %s78
      %s96 = sphi 0, %s96
      %s98 = sphi 0, %s96
      %s99 = sphi 0, %s98
      %s113 = sphi 0, %s99
      %s117 = sphi 0, %s117
      %s119 = sphi 0, %s117
      %s120 = sphi 0, %s119
      %s134 = sphi 0, %s120
      %s138 = sphi 0, %s138
      %s140 = sphi 0, %s138
      %s141 = sphi 0, %s140
      %s155 = sphi 0, %s141
      %s161 = sphi 0, %s163
      %s164 = sphi 0, %s161
      %s165 = sphi 0, %s164
      %s181 = sphi 0, %s165
    $region4: #{tpu_custom_call.1} parent=1 // loop_header_branch
      %18 = sbr.rel (%p16) target = $region8
    $region5: #{tpu_custom_call.1} parent=1 // loop_body
      %s20 = ssub.s32 %s15, 1
      %s21 = ssub.s32 %s15, 2
      %s22 = sadd.s32 %s15, 1
      %s23 = ssub.s32 %s15, %s22
      %p24 = scmp.eq.s32.totalorder %s23, 0
      %s26 = sadd.s32 %s25, 1
      %s27 = scalar_select %p24, %s25, %s26
      %p30 = pneg %p24
      %p31 = scmp.eq.s32.totalorder %s15, 1
      %p32 = por %p30, %p31
      %p33 = scmp.ne.s32.totalorder %s25, %s28
      %p34 = scmp.eq.s32.totalorder %s15, 0
      %p35 = por %p33, %p34
      %p36 = scmp.ne.s32.totalorder %s25, %s28
      %p37 = scmp.eq.s32.totalorder %s20, 1
      %p38 = por %p36, %p37
      %p39 = scmp.ne.s32.totalorder %s28, %s29
      %p40 = scmp.eq.s32.totalorder %s20, 0
      %p41 = por %p39, %p40
      %p42 = scmp.ne.s32.totalorder %s28, %s29
      %p43 = scmp.eq.s32.totalorder %s21, 1
      %p44 = por %p42, %p43
      %p46 = scmp.ne.s32.totalorder %s29, %s45
      %p47 = scmp.eq.s32.totalorder %s21, 0
      %p48 = por %p46, %p47
      %s49 = ssub.s32 %s15, %s22
      %p50 = scmp.eq.s32.totalorder %s49, 0
      %s52 = sadd.s32 %s51, 1
      %s53 = scalar_select %p50, %s51, %s52
      %p56 = pneg %p50
      %p57 = scmp.eq.s32.totalorder %s15, 1
      %p58 = por %p56, %p57
      %p59 = scmp.ne.s32.totalorder %s51, %s54
      %p60 = scmp.eq.s32.totalorder %s15, 0
      %p61 = por %p59, %p60
      %p62 = scmp.ne.s32.totalorder %s51, %s54
      %p63 = scmp.eq.s32.totalorder %s20, 1
      %p64 = por %p62, %p63
      %p65 = scmp.ne.s32.totalorder %s54, %s55
      %p66 = scmp.eq.s32.totalorder %s20, 0
      %p67 = por %p65, %p66
      %p68 = scmp.ne.s32.totalorder %s54, %s55
      %p69 = scmp.eq.s32.totalorder %s21, 1
      %p70 = por %p68, %p69
      %p72 = scmp.ne.s32.totalorder %s55, %s71
      %p73 = scmp.eq.s32.totalorder %s21, 0
      %p74 = por %p72, %p73
      %s76 = sadd.s32 %s75, 1
      %p79 = scmp.eq.s32.totalorder %s15, 1
      %p80 = scmp.ne.s32.totalorder %s75, %s77
      %p81 = scmp.eq.s32.totalorder %s15, 0
      %p82 = por %p80, %p81
      %p83 = scmp.ne.s32.totalorder %s75, %s77
      %p84 = scmp.eq.s32.totalorder %s20, 1
      %p85 = por %p83, %p84
      %p86 = scmp.ne.s32.totalorder %s77, %s78
      %p87 = scmp.eq.s32.totalorder %s20, 0
      %p88 = por %p86, %p87
      %p89 = scmp.ne.s32.totalorder %s77, %s78
      %p90 = scmp.eq.s32.totalorder %s21, 1
      %p91 = por %p89, %p90
      %p93 = scmp.ne.s32.totalorder %s78, %s92
      %p94 = scmp.eq.s32.totalorder %s21, 0
      %p95 = por %p93, %p94
      %s97 = sadd.s32 %s96, 1
      %p100 = scmp.eq.s32.totalorder %s15, 1
      %p101 = scmp.ne.s32.totalorder %s96, %s98
      %p102 = scmp.eq.s32.totalorder %s15, 0
      %p103 = por %p101, %p102
      %p104 = scmp.ne.s32.totalorder %s96, %s98
      %p105 = scmp.eq.s32.totalorder %s20, 1
      %p106 = por %p104, %p105
      %p107 = scmp.ne.s32.totalorder %s98, %s99
      %p108 = scmp.eq.s32.totalorder %s20, 0
      %p109 = por %p107, %p108
      %p110 = scmp.ne.s32.totalorder %s98, %s99
      %p111 = scmp.eq.s32.totalorder %s21, 1
      %p112 = por %p110, %p111
      %p114 = scmp.ne.s32.totalorder %s99, %s113
      %p115 = scmp.eq.s32.totalorder %s21, 0
      %p116 = por %p114, %p115
      %s118 = sadd.s32 %s117, 1
      %p121 = scmp.eq.s32.totalorder %s15, 1
      %p122 = scmp.ne.s32.totalorder %s117, %s119
      %p123 = scmp.eq.s32.totalorder %s15, 0
      %p124 = por %p122, %p123
      %p125 = scmp.ne.s32.totalorder %s117, %s119
      %p126 = scmp.eq.s32.totalorder %s20, 1
      %p127 = por %p125, %p126
      %p128 = scmp.ne.s32.totalorder %s119, %s120
      %p129 = scmp.eq.s32.totalorder %s20, 0
      %p130 = por %p128, %p129
      %p131 = scmp.ne.s32.totalorder %s119, %s120
      %p132 = scmp.eq.s32.totalorder %s21, 1
      %p133 = por %p131, %p132
      %p135 = scmp.ne.s32.totalorder %s120, %s134
      %p136 = scmp.eq.s32.totalorder %s21, 0
      %p137 = por %p135, %p136
      %s139 = sadd.s32 %s138, 1
      %p142 = scmp.eq.s32.totalorder %s15, 1
      %p143 = scmp.ne.s32.totalorder %s138, %s140
      %p144 = scmp.eq.s32.totalorder %s15, 0
      %p145 = por %p143, %p144
      %p146 = scmp.ne.s32.totalorder %s138, %s140
      %p147 = scmp.eq.s32.totalorder %s20, 1
      %p148 = por %p146, %p147
      %p149 = scmp.ne.s32.totalorder %s140, %s141
      %p150 = scmp.eq.s32.totalorder %s20, 0
      %p151 = por %p149, %p150
      %p152 = scmp.ne.s32.totalorder %s140, %s141
      %p153 = scmp.eq.s32.totalorder %s21, 1
      %p154 = por %p152, %p153
      %p156 = scmp.ne.s32.totalorder %s141, %s155
      %p157 = scmp.eq.s32.totalorder %s21, 0
      %p158 = por %p156, %p157
      %s159 = ssub.s32 %s15, %s22
      %p160 = scmp.eq.s32.totalorder %s159, 0
      %s162 = sadd.s32 %s161, 1
      %s163 = scalar_select %p160, %s161, %s162
      %p166 = pneg %p160
      %p167 = scmp.eq.s32.totalorder %s15, 1
      %p168 = por %p166, %p167
      %p169 = scmp.ne.s32.totalorder %s161, %s164
      %p170 = scmp.eq.s32.totalorder %s15, 0
      %p171 = por %p169, %p170
      %p172 = scmp.ne.s32.totalorder %s161, %s164
      %p173 = scmp.eq.s32.totalorder %s20, 1
      %p174 = por %p172, %p173
      %p175 = scmp.ne.s32.totalorder %s164, %s165
      %p176 = scmp.eq.s32.totalorder %s20, 0
      %p177 = por %p175, %p176
      %p178 = scmp.ne.s32.totalorder %s164, %s165
      %p179 = scmp.eq.s32.totalorder %s21, 1
      %p180 = por %p178, %p179
      %p182 = scmp.ne.s32.totalorder %s165, %s181
      %p183 = scmp.eq.s32.totalorder %s21, 0
      %p184 = por %p182, %p183
      %p185 = scmp.le.s32.totalorder 1, %s15
      %p186 = scmp.lt.s32.totalorder %s15, 3
      %p187 = pnand %p185, %p186
      %p188 = pneg %p187
      // Predicated region
      $region9: #{tpu_custom_call.1} parent=5 // pred_check
        _
      $region10: #{tpu_custom_call.1} parent=5 // pred_check_branch
        %190 = sbr.rel (%p187) target = $region12
      $region11: #{tpu_custom_call.1} parent=5 // pred_region
        %s191 = ssub.s32 %s15, 1
        // Predicated region
        $region13: #{tpu_custom_call.1} parent=11 // pred_check
          %p192 = pneg %p88
        $region14: #{tpu_custom_call.1} parent=11 // pred_check_branch
          %194 = sbr.rel (%p192) target = $region16
        $region15: #{tpu_custom_call.1} parent=11 // pred_region
          _
        $region16: #{tpu_custom_call.1} parent=11 // pred_fallthru
          _
        // Predicated region
        $region17: #{tpu_custom_call.1} parent=11 // pred_check
          %p195 = pneg %p109
        $region18: #{tpu_custom_call.1} parent=11 // pred_check_branch
          %197 = sbr.rel (%p195) target = $region20
        $region19: #{tpu_custom_call.1} parent=11 // pred_region
          _
        $region20: #{tpu_custom_call.1} parent=11 // pred_fallthru
          _
        // Predicated region
        $region21: #{tpu_custom_call.1} parent=11 // pred_check
          %p198 = pneg %p130
        $region22: #{tpu_custom_call.1} parent=11 // pred_check_branch
          %200 = sbr.rel (%p198) target = $region24
        $region23: #{tpu_custom_call.1} parent=11 // pred_region
          _
        $region24: #{tpu_custom_call.1} parent=11 // pred_fallthru
          _
        // Predicated region
        $region25: #{tpu_custom_call.1} parent=11 // pred_check
          %p201 = pneg %p151
        $region26: #{tpu_custom_call.1} parent=11 // pred_check_branch
          %203 = sbr.rel (%p201) target = $region28
        $region27: #{tpu_custom_call.1} parent=11 // pred_region
          _
        $region28: #{tpu_custom_call.1} parent=11 // pred_fallthru
          _
      $region12: #{tpu_custom_call.1} parent=5 // pred_fallthru
        _
      %p204 = scmp.lt.s32.totalorder %s15, 2
      // Predicated region
      $region29: #{tpu_custom_call.1} parent=5 // pred_check
        %p205 = pneg %p204
      $region30: #{tpu_custom_call.1} parent=5 // pred_check_branch
        %207 = sbr.rel (%p205) target = $region32
      $region31: #{tpu_custom_call.1} parent=5 // pred_region
        // Predicated region
        $region33: #{tpu_custom_call.1} parent=31 // pred_check
          %p208 = pneg %p35
        $region34: #{tpu_custom_call.1} parent=31 // pred_check_branch
          %210 = sbr.rel (%p208) target = $region36
        $region35: #{tpu_custom_call.1} parent=31 // pred_region
          %p211 = scmp.lt.s32.totalorder %s15, 1
          %s212 = scalar_select %p211, %s15, 1
          %s213 = smul.addr %s212, 2
          %s214 = smul.addr %s213, 4
          %s215 = scalar_lea.vmem %s0, %s214
        $region36: #{tpu_custom_call.1} parent=31 // pred_fallthru
          _
        // Predicated region
        $region37: #{tpu_custom_call.1} parent=31 // pred_check
          %p216 = pneg %p61
        $region38: #{tpu_custom_call.1} parent=31 // pred_check_branch
          %218 = sbr.rel (%p216) target = $region40
        $region39: #{tpu_custom_call.1} parent=31 // pred_region
          %p219 = scmp.lt.s32.totalorder %s15, 1
          %s220 = scalar_select %p219, %s15, 1
          %s221 = smul.addr %s220, 8
          %s222 = scalar_lea.vmem %s1, %s221
        $region40: #{tpu_custom_call.1} parent=31 // pred_fallthru
          _
      $region32: #{tpu_custom_call.1} parent=5 // pred_fallthru
        _
      %p223 = scmp.le.s32.totalorder 1, %s15
      %p224 = scmp.lt.s32.totalorder %s15, 3
      %p225 = pnand %p223, %p224
      %p226 = pneg %p225
      // Predicated region
      $region41: #{tpu_custom_call.1} parent=5 // pred_check
        _
      $region42: #{tpu_custom_call.1} parent=5 // pred_check_branch
        %228 = sbr.rel (%p225) target = $region44
      $region43: #{tpu_custom_call.1} parent=5 // pred_region
        %s229 = ssub.s32 %s15, 1
        %p230 = scmp.lt.s32.totalorder %s20, 1
        %s231 = scalar_select %p230, %s20, 1
        %s232 = smul.addr %s231, 2
        %s233 = smul.addr %s232, 4
        %s234 = scalar_lea.vmem %s0, %s233
        %p235 = pneg %p41
        %p236 = pneg %p38
        %p237 = scmp.lt.s32.totalorder %s20, 1
        %s238 = scalar_select %p237, %s20, 1
        %s239 = smul.addr %s238, 8
        %s240 = scalar_lea.vmem %s1, %s239
        %p241 = pneg %p67
        %p242 = pneg %p64
        %p243 = pneg %p88
        %p244 = pneg %p85
        %p245 = pneg %p109
        %p246 = pneg %p106
        %p247 = pneg %p130
        %p248 = pneg %p127
        %p249 = pneg %p151
        %p250 = pneg %p148
        %p251 = pneg %p177
        %p252 = pneg %p174
        %s253 = sand.u32 %s164, 1
        %s254 = scalar_lea.sflag [#allocation3], %s253
        %s255 = sand.u32 %s164, 1
        %s256 = smul.addr %s255, 8
        %s257 = scalar_lea.vmem [#allocation2], %s256
        %p258 = scmp.lt.s32.totalorder %s20, 1
        %s259 = scalar_select %p258, %s20, 1
        %s260 = smul.addr %s259, 2
        %s261 = smul.addr %s260, 4
        %s262 = scalar_lea.vmem %s0, %s261
        %p263 = scmp.lt.s32.totalorder %s20, 1
        %s264 = scalar_select %p263, %s20, 1
        %s265 = smul.addr %s264, 8
        %s266 = scalar_lea.vmem %s1, %s265
        %v268 = vld [vmem:[%s2] sm:$0xf]
        %v269 = vld [vmem:[%s262] sm:$0xf]
        %v270 = vld [vmem:[%s262 + $0x4] sm:$0xf]
        %v271 = vld [vmem:[%s3] sm:$0xff]
        %273 = vset.pattern.permute.xlu0 0
        %274 = vperm.xlu0 %273, %v271
        %v275 = vpop.permute.xlu0 %274
        %v279 = vunpack.c.l.b16 %v269
        %v280 = vunpack.c.l.b16 %v270
        %v281 = vpack.c.b16 %v280, %v279
        %vm283 = vcmask 130048
        %v285 = vsel %vm283, %v268, 0
        %287 = vmatpush.bf16.msra.mxu0 0
        %288 = vmatpush.bf16.msra.mxu0 0
        %289 = vmatpush.bf16.msra.mxu0 0
        %290 = vmatpush.bf16.msra.mxu0 0
        %291 = vmatpush.bf16.msra.mxu0 0
        %292 = vmatpush.bf16.msra.mxu0 0
        %293 = vmatpush.bf16.msra.mxu0 0
        %294 = vmatpush.bf16.msra.mxu0 %v281
        %295 = vmatmul.bf16.gmra.mxu0 %v285
        %v296 = vpop.f32.mrf.mxu0
        %v297 = vadd.f32 %v275, %v296
        %v298 = vpop.f32.mrf.mxu0
        %299 = vdwg.mxu0
        %vm300 = vcmask 519168
        %v301 = vsel %vm300, %v297, 0.0
        %302 = vadd.xlane.f32.xlu0 %v301
        %v303 = vpop.xlane.xlu0 %302
        %v304 = vrot.slane %v303, 4
        %v305 = vadd.f32 %v303, %v304
        %v306 = vrot.slane %v305, 2
        %v307 = vadd.f32 %v305, %v306
        %v308 = vrot.slane %v307, 1
        %v309 = vadd.f32 %v307, %v308
        %s310 = vtos %v309
        %v311 = vstv %s310
        %v312 = vmul.f32 %v311, 0.00390625
        %v313 = vsub.f32 %v297, %v312
        %v314 = vmul.f32 %v313, %v313
        %v315 = vsel %vm300, %v314, 0.0
        %316 = vadd.xlane.f32.xlu0 %v315
        %v317 = vpop.xlane.xlu0 %316
        %v318 = vrot.slane %v317, 4
        %v319 = vadd.f32 %v317, %v318
        %v320 = vrot.slane %v319, 2
        %v321 = vadd.f32 %v319, %v320
        %v322 = vrot.slane %v321, 1
        %v323 = vadd.f32 %v321, %v322
        %s324 = vtos %v323
        %v325 = vstv %s324
        %v326 = vmul.f32 %v325, 0.00390625
        %v327 = vadd.f32 %v326, 1e-05
        %v328 = vrsqrt.pop %v327
        %v329 = vmul.f32 %v328, %v327
        %v330 = vmul.f32 %v329, %v328
        %v331 = vmul.f32 0.5, %v330
        %v332 = vsub.f32 1.5, %v331
        %v333 = vmul.f32 %v328, %v332
        %vm334 = vweird.f32 %v327
        %vm335 = vweird.f32 %v328
        %vm336 = vmor %vm334, %vm335
        %v337 = vsel %vm336, %v328, %v333
        %v339 = vrot.slane %v297, 4
        %v341 = vsel %vm300, %v339, 0.0
        %342 = vadd.xlane.f32.xlu0 %v341
        %v343 = vpop.xlane.xlu0 %342
        %v344 = vrot.slane %v343, 4
        %v345 = vadd.f32 %v343, %v344
        %v346 = vrot.slane %v345, 2
        %v347 = vadd.f32 %v345, %v346
        %v348 = vrot.slane %v347, 1
        %v349 = vadd.f32 %v347, %v348
        %s350 = vtos %v349
        %v351 = vstv %s350
        %v352 = vmul.f32 %v351, 0.00390625
        %v353 = vsub.f32 %v297, %v352
        %v354 = vmul.f32 %v353, %v353
        %v356 = vrot.slane %v354, 4
        %v358 = vsel %vm300, %v356, 0.0
        %359 = vadd.xlane.f32.xlu0 %v358
        %v360 = vpop.xlane.xlu0 %359
        %v361 = vrot.slane %v360, 4
        %v362 = vadd.f32 %v360, %v361
        %v363 = vrot.slane %v362, 2
        %v364 = vadd.f32 %v362, %v363
        %v365 = vrot.slane %v364, 1
        %v366 = vadd.f32 %v364, %v365
        %s367 = vtos %v366
        %v368 = vstv %s367
        %v369 = vmul.f32 %v368, 0.00390625
        %v370 = vadd.f32 %v369, 1e-05
        %v371 = vrsqrt.pop %v370
        %v372 = vmul.f32 %v371, %v370
        %v373 = vmul.f32 %v372, %v371
        %v374 = vmul.f32 0.5, %v373
        %v375 = vsub.f32 1.5, %v374
        %v376 = vmul.f32 %v371, %v375
        %vm377 = vweird.f32 %v370
        %vm378 = vweird.f32 %v371
        %vm379 = vmor %vm377, %vm378
        %v380 = vsel %vm379, %v371, %v376
        %vm381 = vcmask 1043456
        %v382 = vsel %vm381, %v312, %v352
        %v383 = vsel %vm381, %v337, %v380
        %385 = vset.pattern.permute.xlu0 0
        %386 = vperm.xlu0 %385, %v382
        %v387 = vpop.permute.xlu0 %386
        %v389 = vsub.f32 %v297, %v387
        %v390 = vld [vmem:[%s4] sm:$0xff]
        %v391 = vmul.f32 %v383, %v390
        %393 = vset.pattern.permute.xlu0 0
        %394 = vperm.xlu0 %393, %v391
        %v395 = vpop.permute.xlu0 %394
        %v397 = vmul.f32 %v389, %v395
        %v398 = vld [vmem:[%s5] sm:$0xff]
        %400 = vset.pattern.permute.xlu0 0
        %401 = vperm.xlu0 %400, %v398
        %v402 = vpop.permute.xlu0 %401
        %v404 = vadd.f32 %v397, %v402
        %v405 = vmax.f32 %v404, 0.0
        %v406 = vld [vmem:[%s266] sm:$0xff]
        %408 = vset.pattern.permute.xlu0 0
        %409 = vperm.xlu0 %408, %v406
        %v410 = vpop.permute.xlu0 %409
        %v412 = vadd.f32 %v405, %v410
        %vm413 = vcmask 523264
        %414 = vst.msk [vmem:[%s257] sm:$0xff] %vm413, %v412
        %s415 = sand.u32 %s164, 1
        %s416 = scalar_lea.sflag [#allocation3], %s415
        %s417 = sand.u32 %s164, 1
        %s418 = smul.addr %s417, 8
        %s419 = scalar_lea.vmem [#allocation2], %s418
        // Predicated region
        $region45: #{tpu_custom_call.1} parent=43 // pred_check
          %p420 = pneg %p174
        $region46: #{tpu_custom_call.1} parent=43 // pred_check_branch
          %422 = sbr.rel (%p420) target = $region48
        $region47: #{tpu_custom_call.1} parent=43 // pred_region
          %424 = vsyncadd %s416, 0
          %s425 = smul.addr %s20, 8
          %s426 = scalar_lea.hbm %s6, %s425
          %s428 = sshll.u32 %s419, 4
          %s429 = int_to_ptr.vmem [resolvable:$true] %s428
          %s430 = sshll.u32 %s426, 4
          %s431 = int_to_ptr.hbm [resolvable:$true] %s430
          %433 = dma.vmem_to_hbm [thread:$0]  %s429, 128, %s431, %s416
        $region48: #{tpu_custom_call.1} parent=43 // pred_fallthru
          _
      $region44: #{tpu_custom_call.1} parent=5 // pred_fallthru
        _
      %p434 = scmp.le.s32.totalorder 2, %s15
      // Predicated region
      $region49: #{tpu_custom_call.1} parent=5 // pred_check
        %p435 = pneg %p434
      $region50: #{tpu_custom_call.1} parent=5 // pred_check_branch
        %437 = sbr.rel (%p435) target = $region52
      $region51: #{tpu_custom_call.1} parent=5 // pred_region
        %s438 = ssub.s32 %s15, 2
        // Predicated region
        $region53: #{tpu_custom_call.1} parent=51 // pred_check
          %p439 = pneg %p180
        $region54: #{tpu_custom_call.1} parent=51 // pred_check_branch
          %441 = sbr.rel (%p439) target = $region56
        $region55: #{tpu_custom_call.1} parent=51 // pred_region
          %s442 = sand.u32 %s165, 1
          %s443 = scalar_lea.sflag [#allocation3], %s442
          %s444 = sand.u32 %s165, 1
          %s445 = smul.addr %s444, 8
          %s446 = scalar_lea.vmem [#allocation2], %s445
          %448 = dma.done %s443, 128
        $region56: #{tpu_custom_call.1} parent=51 // pred_fallthru
          _
      $region52: #{tpu_custom_call.1} parent=5 // pred_fallthru
        _
    $region6: #{tpu_custom_call.1} parent=1 // loop_footer
      %s19 = sadd.s32 1, %s15
    $region7: #{tpu_custom_call.1} parent=1 // loop_footer_branch
      %14 = sbr.rel target = $region3
    $region8: #{tpu_custom_call.1} parent=1 // loop_exit
      _
    %449 = vsyncpa [#allocation3], 1
    %s450 = scalar_lea.sflag [#allocation3], 1
    %451 = vsyncpa %s450, 1

</llo_original>
